<compile_context>
chip_gen: v7x
topology: tpu7x:2x2x1
jax: 0.10.0
libtpu: 0.0.40
codegen_flags: <defaults>
</compile_context>

<pallas_src>
import functools

import numpy as np
import jax
import jax.numpy as jnp
from jax import lax
from jax.experimental import pallas as pl
from jax.experimental.pallas import tpu as pltpu


_VMEM_LIMIT_BYTES = 32 * 1024 * 1024    # safe scoped limit on v5e / v6e / v7x
_BLOCK_BUDGET_BYTES = 4 * 1024 * 1024   # padded bytes per pipelined block (~roofline knee)


def _round_up(n, m):
    return ((n + m - 1) // m) * m


# ------------------------- shared in-kernel gate math -------------------------
def _gate_from_means(xm, bits, u_t, z_t):
    """xm: (Bt, C) channel means -> (Bt, C) Pauli-Z expectations of the circuit."""
    Bt, C = xm.shape
    D = bits.shape[1]
    # product state after H then RY(theta_j):
    #   amp_j(0) = cos(theta_j/2 + pi/4),  amp_j(1) = sin(theta_j/2 + pi/4)
    half = xm * 0.5 + jnp.float32(np.pi / 4.0)
    cos_a = jnp.cos(half)                               # (Bt, C)
    sin_a = jnp.sin(half)
    psi_enc = jnp.ones((Bt, D), dtype=jnp.float32)
    for j in range(C):                                  # static & tiny: C wires, D = 2^C
        aj = jnp.where(bits[j:j + 1, :] > 0.5,
                       sin_a[:, j:j + 1], cos_a[:, j:j + 1])    # (Bt, D)
        psi_enc = psi_enc * aj
    # fixed (entangler + trainable RY) unitary, then Pauli-Z expectations.
    # fp32 on purpose: D = 2^C is far below the MXU tile; this path is negligible.
    psi = jnp.dot(psi_enc, u_t, preferred_element_type=jnp.float32)
    probs = psi * psi
    return jnp.dot(probs, z_t, preferred_element_type=jnp.float32)   # (Bt, C)


# ------------------------------ Pallas kernels --------------------------------
def _qse_fused_kernel(x_ref, bits_ref, u_t_ref, z_t_ref, o_ref, *, inv_L):
    """Fused squeeze + gate + excite on a resident (b_tile, C, full-L) block."""
    # squeeze: per-(batch, channel) mean over the full, resident L axis
    xm = jnp.sum(x_ref[...], axis=2) * jnp.float32(inv_L)          # (Bt, C)
    gate = _gate_from_means(xm, bits_ref[...], u_t_ref[...], z_t_ref[...])
    # excite: re-read the resident VMEM block (keeps per-vreg liveness; VMEM reads
    # are cheap and sit entirely under the HBM DMA slack)
    o_ref[...] = x_ref[...] * jnp.expand_dims(gate, 2)


def _gate_kernel(x_ref, bits_ref, u_t_ref, z_t_ref, g_ref, *, L_total, l_tile):
    """Two-pass fallback, pass 1: accumulate the L-sum directly into the resident
    gate output block; on the last L step run the tiny circuit math."""
    li = pl.program_id(1)
    n_l = pl.num_programs(1)

    @pl.when(li == 0)
    def _():
        g_ref[...] = jnp.zeros_like(g_ref)

    @pl.when(li < n_l - 1)
    def _():
        g_ref[...] += jnp.sum(x_ref[...], axis=2)

    @pl.when(li == n_l - 1)
    def _():
        x_blk = x_ref[...]
        if L_total % l_tile != 0:
            # mask lanes past the true end of L -- ragged FINAL block only
            lane = lax.broadcasted_iota(jnp.int32, x_blk.shape, 2) + li * l_tile
            x_blk = jnp.where(lane < L_total, x_blk, 0.0)
        sums = g_ref[...] + jnp.sum(x_blk, axis=2)
        xm = sums * jnp.float32(1.0 / L_total)          # mean over the FULL length
        g_ref[...] = _gate_from_means(xm, bits_ref[...], u_t_ref[...], z_t_ref[...])


def _scale_kernel(x_ref, g_ref, o_ref):
    """Two-pass fallback, pass 2: lane-dense broadcast scale (Rt, Lt) * (Rt, 1)."""
    o_ref[...] = x_ref[...] * g_ref[...]


# --------------------------- host-side circuit glue ----------------------------
def _ry_mat(theta):
    c, s = np.cos(theta / 2.0), np.sin(theta / 2.0)
    return np.array([[c, -s], [s, c]], dtype=np.float64)


def _single_qubit_op(gate, wire, n):
    op = np.eye(1)
    for j in range(n):
        op = np.kron(op, gate if j == wire else np.eye(2))
    return op


def _cnot_mat(control, target, n):
    d = 2 ** n
    m = np.zeros((d, d))
    for state in range(d):
        cbit = (state >> (n - 1 - control)) & 1
        new = state ^ (cbit << (n - 1 - target))
        m[new, state] = 1.0
    return m


def _build_fixed_unitary(weights, n):
    """[entangling layer -> RY(weights[k]) layer] repeated; real orthogonal matrix."""
    d = 2 ** n
    ent = np.eye(d)
    for i in range(0, n - 1, 2):
        ent = _cnot_mat(i, i + 1, n) @ ent
    for i in range(1, n - 1, 2):
        ent = _cnot_mat(i, i + 1, n) @ ent
    u = np.eye(d)
    for k in range(weights.shape[0]):
        u = ent @ u
        r = np.eye(d)
        for j in range(n):
            r = _single_qubit_op(_ry_mat(weights[k, j]), j, n) @ r
        u = r @ u
    return u


def _circuit_constants(q_para, n):
    """Input-independent circuit constants (host NumPy; not part of the hot path)."""
    D = 2 ** n
    U = _build_fixed_unitary(np.asarray(q_para, dtype=np.float64), n)
    bits = np.zeros((n, D), dtype=np.float32)
    for j in range(n):
        for s in range(D):
            bits[j, s] = (s >> (n - 1 - j)) & 1
    z_t = (1.0 - 2.0 * bits.T).astype(np.float32)        # (D, C), entries +-1
    u_t = np.ascontiguousarray(U.T).astype(np.float32)   # (D, D) = U_fixed^T
    return jnp.asarray(bits), jnp.asarray(u_t), jnp.asarray(z_t)


# ------------------------------- forward wrapper --------------------------------
def qse_forward(x, q_para, *, force_two_pass=False):
    x = jnp.asarray(x, dtype=jnp.float32)
    B, C, L = x.shape
    D = 2 ** C
    bits_j, u_t_j, z_t_j = _circuit_constants(q_para, C)

    c_pad = _round_up(C, 8)               # sublane padding of the (C, L) minor dims
    l_pad = _round_up(L, 128)             # lane padding
    per_batch_vmem = c_pad * l_pad * 4    # padded VMEM bytes of one (1, C, L) slab

    if not force_two_pass and per_batch_vmem <= _BLOCK_BUDGET_BYTES:
        # ----------------- fused path: 1 read + 1 write of x -----------------
        b_tile = max(1, min(B, _BLOCK_BUDGET_BYTES // per_batch_vmem))
        if pl.cdiv(B, b_tile) < 2 and B >= 2 and b_tile >= 16:
            b_tile = pl.cdiv(B, 2)        # >= 2 parallel blocks -> both v7x TensorCores
        grid = (pl.cdiv(B, b_tile),)
        return pl.pallas_call(
            functools.partial(_qse_fused_kernel, inv_L=1.0 / L),
            out_shape=jax.ShapeDtypeStruct((B, C, L), jnp.float32),
            grid_spec=pltpu.PrefetchScalarGridSpec(
                num_scalar_prefetch=0,
                grid=grid,
                in_specs=[
                    pl.BlockSpec((b_tile, C, L), lambda bi: (bi, 0, 0)),
                    # circuit constants: constant block index -> DMA'd once, resident
                    pl.BlockSpec((C, D), lambda bi: (0, 0)),
                    pl.BlockSpec((D, D), lambda bi: (0, 0)),
                    pl.BlockSpec((D, C), lambda bi: (0, 0)),
                ],
                out_specs=pl.BlockSpec((b_tile, C, L), lambda bi: (bi, 0, 0)),
            ),
            compiler_params=pltpu.CompilerParams(
                dimension_semantics=("parallel",),
                vmem_limit_bytes=_VMEM_LIMIT_BYTES,
            ),
        )(x, bits_j, u_t_j, z_t_j)

    # ---------- two-pass fallback (L too large to keep fully resident) ----------
    # pass 1: squeeze + quantum gate -> gate (B, C)
    l_tile = L if L <= 8192 else 8192
    per_batch1 = c_pad * _round_up(l_tile, 128) * 4
    b_tile1 = max(1, min(B, _BLOCK_BUDGET_BYTES // per_batch1))
    if pl.cdiv(B, b_tile1) < 2 and B >= 2 and b_tile1 >= 16:
        b_tile1 = pl.cdiv(B, 2)
    grid1 = (pl.cdiv(B, b_tile1), pl.cdiv(L, l_tile))

    gate = pl.pallas_call(
        functools.partial(_gate_kernel, L_total=L, l_tile=l_tile),
        out_shape=jax.ShapeDtypeStruct((B, C), jnp.float32),
        grid_spec=pltpu.PrefetchScalarGridSpec(
            num_scalar_prefetch=0,
            grid=grid1,
            in_specs=[
                pl.BlockSpec((b_tile1, C, l_tile), lambda bi, li: (bi, 0, li)),
                pl.BlockSpec((C, D), lambda bi, li: (0, 0)),
                pl.BlockSpec((D, D), lambda bi, li: (0, 0)),
                pl.BlockSpec((D, C), lambda bi, li: (0, 0)),
            ],
            out_specs=pl.BlockSpec((b_tile1, C), lambda bi, li: (bi, 0)),
        ),
        compiler_params=pltpu.CompilerParams(
            dimension_semantics=("parallel", "arbitrary"),
            vmem_limit_bytes=_VMEM_LIMIT_BYTES,
        ),
    )(x, bits_j, u_t_j, z_t_j)

    # pass 2: lane-dense excite, x:(B*C, L) * gate:(B*C, 1), ~4 MiB blocks
    R = B * C
    x2 = x.reshape(R, L)
    g2 = gate.reshape(R, 1)
    l_tile2 = L if L <= 4096 else 4096
    rows_budget = max(8, _BLOCK_BUDGET_BYTES // (_round_up(l_tile2, 128) * 4))
    if R <= rows_budget or R < 8:
        r_tile = R
    else:
        r_tile = max(8, (rows_budget // 8) * 8)
    grid2 = (pl.cdiv(R, r_tile), pl.cdiv(L, l_tile2))

    # TODO(synk): if the caller donates x, input_output_aliases={0: 0} here would
    # avoid allocating a second B*C*L HBM buffer (HBM traffic itself is unchanged).
    y2 = pl.pallas_call(
        _scale_kernel,
        out_shape=jax.ShapeDtypeStruct((R, L), jnp.float32),
        grid_spec=pltpu.PrefetchScalarGridSpec(
            num_scalar_prefetch=0,
            grid=grid2,
            in_specs=[
                pl.BlockSpec((r_tile, l_tile2), lambda ri, li: (ri, li)),
                pl.BlockSpec((r_tile, 1), lambda ri, li: (ri, 0)),
            ],
            out_specs=pl.BlockSpec((r_tile, l_tile2), lambda ri, li: (ri, li)),
        ),
        compiler_params=pltpu.CompilerParams(
            dimension_semantics=("parallel", "parallel"),
            vmem_limit_bytes=_VMEM_LIMIT_BYTES,
        ),
    )(x2, g2)
    return y2.reshape(B, C, L)


# ------------------------ gate-by-gate NumPy reference -----------------------
def qse_reference(x, q_para):
    x = np.asarray(x, dtype=np.float64)
    q_para = np.asarray(q_para, dtype=np.float64)
    B, C, L = x.shape
    n, d = C, 2 ** C
    xm = x.mean(axis=2)
    H = (1.0 / np.sqrt(2.0)) * np.array([[1.0, 1.0], [1.0, -1.0]])
    gate = np.zeros((B, C))
    for b in range(B):
        psi = np.zeros(d); psi[0] = 1.0
        for j in range(n):
            psi = _single_qubit_op(H, j, n) @ psi
        for j in range(n):
            psi = _single_qubit_op(_ry_mat(xm[b, j]), j, n) @ psi
        for k in range(q_para.shape[0]):
            for i in range(0, n - 1, 2):
                psi = _cnot_mat(i, i + 1, n) @ psi
            for i in range(1, n - 1, 2):
                psi = _cnot_mat(i, i + 1, n) @ psi
            for j in range(n):
                psi = _single_qubit_op(_ry_mat(q_para[k, j]), j, n) @ psi
        for j in range(n):
            zdiag = np.array([1 - 2 * ((s >> (n - 1 - j)) & 1) for s in range(d)])
            gate[b, j] = np.sum(zdiag * psi ** 2)
    return x * gate[:, :, None]


# ----------------------------------- main ------------------------------------
if __name__ == "__main__":
    key = jax.random.PRNGKey(0)
    k_x, k_w = jax.random.split(key)

    B, wires, L = 2, 4, 16
    circuit_layers = 2

    x = jax.random.normal(k_x, (B, wires, L), dtype=jnp.float32)
    # deterministic init of Qdense.q_para (shape: (circuit_layers, wires))
    q_para = jax.random.normal(k_w, (circuit_layers, wires), dtype=jnp.float32)

    y_ref = qse_reference(np.asarray(x), np.asarray(q_para))

    # default (fused) path
    y = jax.block_until_ready(qse_forward(x, q_para))
    assert y.shape == (B, wires, L)
    assert np.allclose(np.asarray(y), y_ref, atol=1e-4, rtol=1e-4)

    # two-pass fallback path (used when L is too large for full-L residency)
    y2 = jax.block_until_ready(qse_forward(x, q_para, force_two_pass=True))
    assert np.allclose(np.asarray(y2), y_ref, atol=1e-4, rtol=1e-4)

    print("KERNEL_OK")
</pallas_src>

<mosaic_0001>
module attributes {stable_mosaic.version = 11 : i64} {
  func.func @_qse_fused_kernel(%arg0: i32, %arg1: memref<2x4x16xf32, #tpu.memory_space<vmem>>, %arg2: memref<4x16xf32, #tpu.memory_space<vmem>>, %arg3: memref<16x16xf32, #tpu.memory_space<vmem>>, %arg4: memref<16x4xf32, #tpu.memory_space<vmem>>, %arg5: memref<2x4x16xf32, #tpu.memory_space<vmem>>) attributes {dimension_semantics = [#tpu.dimension_semantics<parallel>], iteration_bounds = array<i64: 1>, scalar_prefetch = 0 : i64, scratch_operands = 0 : i64, tpu.core_type = #tpu.core_type<tc>, window_params = [{transform_indices = @transform_0, window_bounds = array<i64: 2, 4, 16>}, {pipeline_mode = #tpu.pipeline_mode<synchronous>, transform_indices = @transform_1, window_bounds = array<i64: 4, 16>}, {pipeline_mode = #tpu.pipeline_mode<synchronous>, transform_indices = @transform_2, window_bounds = array<i64: 16, 16>}, {pipeline_mode = #tpu.pipeline_mode<synchronous>, transform_indices = @transform_3, window_bounds = array<i64: 16, 4>}, {transform_indices = @transform_4, window_bounds = array<i64: 2, 4, 16>}]} {
    %c0 = arith.constant 0 : index
    %c0_0 = arith.constant 0 : index
    %c0_1 = arith.constant 0 : index
    %0 = vector.load %arg1[%c0, %c0_0, %c0_1] : memref<2x4x16xf32, #tpu.memory_space<vmem>>, vector<2x4x16xf32>
    %cst = arith.constant dense<0.000000e+00> : vector<2x4xf32>
    %1 = vector.multi_reduction <add>, %0, %cst [2] : vector<2x4x16xf32> to vector<2x4xf32>
    %cst_2 = arith.constant 6.250000e-02 : f32
    %2 = vector.broadcast %cst_2 : f32 to vector<2x4xf32>
    %3 = arith.mulf %1, %2 : vector<2x4xf32>
    %c0_3 = arith.constant 0 : index
    %c0_4 = arith.constant 0 : index
    %4 = vector.load %arg2[%c0_3, %c0_4] : memref<4x16xf32, #tpu.memory_space<vmem>>, vector<4x16xf32>
    %c0_5 = arith.constant 0 : index
    %c0_6 = arith.constant 0 : index
    %5 = vector.load %arg3[%c0_5, %c0_6] : memref<16x16xf32, #tpu.memory_space<vmem>>, vector<16x16xf32>
    %c0_7 = arith.constant 0 : index
    %c0_8 = arith.constant 0 : index
    %6 = vector.load %arg4[%c0_7, %c0_8] : memref<16x4xf32, #tpu.memory_space<vmem>>, vector<16x4xf32>
    %cst_9 = arith.constant 5.000000e-01 : f32
    %7 = vector.broadcast %cst_9 : f32 to vector<2x4xf32>
    %8 = arith.mulf %3, %7 : vector<2x4xf32>
    %cst_10 = arith.constant 0.785398185 : f32
    %9 = vector.broadcast %cst_10 : f32 to vector<2x4xf32>
    %10 = arith.addf %8, %9 : vector<2x4xf32>
    %11 = math.cos %10 : vector<2x4xf32>
    %12 = math.sin %10 : vector<2x4xf32>
    %cst_11 = arith.constant 1.000000e+00 : f32
    %13 = vector.broadcast %cst_11 : f32 to vector<2x16xf32>
    %14 = vector.extract_strided_slice %4 {offsets = [0, 0], sizes = [1, 16], strides = [1, 1]} : vector<4x16xf32> to vector<1x16xf32>
    %cst_12 = arith.constant 5.000000e-01 : f32
    %15 = vector.broadcast %cst_12 : f32 to vector<1x16xf32>
    %16 = arith.cmpf ogt, %14, %15 : vector<1x16xf32>
    %17 = vector.extract_strided_slice %12 {offsets = [0, 0], sizes = [2, 1], strides = [1, 1]} : vector<2x4xf32> to vector<2x1xf32>
    %18 = vector.extract_strided_slice %11 {offsets = [0, 0], sizes = [2, 1], strides = [1, 1]} : vector<2x4xf32> to vector<2x1xf32>
    %19 = vector.shape_cast %16 : vector<1x16xi1> to vector<1x16xi1>
    %20 = vector.broadcast %19 : vector<1x16xi1> to vector<2x16xi1>
    %21 = vector.shape_cast %17 : vector<2x1xf32> to vector<2x1xf32>
    %22 = vector.broadcast %21 : vector<2x1xf32> to vector<2x16xf32>
    %23 = vector.shape_cast %18 : vector<2x1xf32> to vector<2x1xf32>
    %24 = vector.broadcast %23 : vector<2x1xf32> to vector<2x16xf32>
    %25 = arith.select %20, %22, %24 : vector<2x16xi1>, vector<2x16xf32>
    %26 = arith.mulf %13, %25 : vector<2x16xf32>
    %27 = vector.extract_strided_slice %4 {offsets = [1, 0], sizes = [1, 16], strides = [1, 1]} : vector<4x16xf32> to vector<1x16xf32>
    %cst_13 = arith.constant 5.000000e-01 : f32
    %28 = vector.broadcast %cst_13 : f32 to vector<1x16xf32>
    %29 = arith.cmpf ogt, %27, %28 : vector<1x16xf32>
    %30 = vector.extract_strided_slice %12 {offsets = [0, 1], sizes = [2, 1], strides = [1, 1]} : vector<2x4xf32> to vector<2x1xf32>
    %31 = vector.extract_strided_slice %11 {offsets = [0, 1], sizes = [2, 1], strides = [1, 1]} : vector<2x4xf32> to vector<2x1xf32>
    %32 = vector.shape_cast %29 : vector<1x16xi1> to vector<1x16xi1>
    %33 = vector.broadcast %32 : vector<1x16xi1> to vector<2x16xi1>
    %34 = vector.shape_cast %30 : vector<2x1xf32> to vector<2x1xf32>
    %35 = vector.broadcast %34 : vector<2x1xf32> to vector<2x16xf32>
    %36 = vector.shape_cast %31 : vector<2x1xf32> to vector<2x1xf32>
    %37 = vector.broadcast %36 : vector<2x1xf32> to vector<2x16xf32>
    %38 = arith.select %33, %35, %37 : vector<2x16xi1>, vector<2x16xf32>
    %39 = arith.mulf %26, %38 : vector<2x16xf32>
    %40 = vector.extract_strided_slice %4 {offsets = [2, 0], sizes = [1, 16], strides = [1, 1]} : vector<4x16xf32> to vector<1x16xf32>
    %cst_14 = arith.constant 5.000000e-01 : f32
    %41 = vector.broadcast %cst_14 : f32 to vector<1x16xf32>
    %42 = arith.cmpf ogt, %40, %41 : vector<1x16xf32>
    %43 = vector.extract_strided_slice %12 {offsets = [0, 2], sizes = [2, 1], strides = [1, 1]} : vector<2x4xf32> to vector<2x1xf32>
    %44 = vector.extract_strided_slice %11 {offsets = [0, 2], sizes = [2, 1], strides = [1, 1]} : vector<2x4xf32> to vector<2x1xf32>
    %45 = vector.shape_cast %42 : vector<1x16xi1> to vector<1x16xi1>
    %46 = vector.broadcast %45 : vector<1x16xi1> to vector<2x16xi1>
    %47 = vector.shape_cast %43 : vector<2x1xf32> to vector<2x1xf32>
    %48 = vector.broadcast %47 : vector<2x1xf32> to vector<2x16xf32>
    %49 = vector.shape_cast %44 : vector<2x1xf32> to vector<2x1xf32>
    %50 = vector.broadcast %49 : vector<2x1xf32> to vector<2x16xf32>
    %51 = arith.select %46, %48, %50 : vector<2x16xi1>, vector<2x16xf32>
    %52 = arith.mulf %39, %51 : vector<2x16xf32>
    %53 = vector.extract_strided_slice %4 {offsets = [3, 0], sizes = [1, 16], strides = [1, 1]} : vector<4x16xf32> to vector<1x16xf32>
    %cst_15 = arith.constant 5.000000e-01 : f32
    %54 = vector.broadcast %cst_15 : f32 to vector<1x16xf32>
    %55 = arith.cmpf ogt, %53, %54 : vector<1x16xf32>
    %56 = vector.extract_strided_slice %12 {offsets = [0, 3], sizes = [2, 1], strides = [1, 1]} : vector<2x4xf32> to vector<2x1xf32>
    %57 = vector.extract_strided_slice %11 {offsets = [0, 3], sizes = [2, 1], strides = [1, 1]} : vector<2x4xf32> to vector<2x1xf32>
    %58 = vector.shape_cast %55 : vector<1x16xi1> to vector<1x16xi1>
    %59 = vector.broadcast %58 : vector<1x16xi1> to vector<2x16xi1>
    %60 = vector.shape_cast %56 : vector<2x1xf32> to vector<2x1xf32>
    %61 = vector.broadcast %60 : vector<2x1xf32> to vector<2x16xf32>
    %62 = vector.shape_cast %57 : vector<2x1xf32> to vector<2x1xf32>
    %63 = vector.broadcast %62 : vector<2x1xf32> to vector<2x16xf32>
    %64 = arith.select %59, %61, %63 : vector<2x16xi1>, vector<2x16xf32>
    %65 = arith.mulf %52, %64 : vector<2x16xf32>
    %cst_16 = arith.constant dense<0.000000e+00> : vector<2x16xf32>
    %66 = tpu.matmul %65, %5, %cst_16 {dimension_numbers = #tpu.dot_dimension_numbers<[1], [0], [0], [1], [0, 0, 1, 1], [], []>} : vector<2x16xf32>, vector<16x16xf32>, vector<2x16xf32> -> vector<2x16xf32>
    %67 = arith.mulf %66, %66 : vector<2x16xf32>
    %cst_17 = arith.constant dense<0.000000e+00> : vector<2x4xf32>
    %68 = tpu.matmul %67, %6, %cst_17 {dimension_numbers = #tpu.dot_dimension_numbers<[1], [0], [0], [1], [0, 0, 1, 1], [], []>} : vector<2x16xf32>, vector<16x4xf32>, vector<2x4xf32> -> vector<2x4xf32>
    %c0_18 = arith.constant 0 : index
    %c0_19 = arith.constant 0 : index
    %c0_20 = arith.constant 0 : index
    %69 = vector.load %arg1[%c0_18, %c0_19, %c0_20] : memref<2x4x16xf32, #tpu.memory_space<vmem>>, vector<2x4x16xf32>
    %70 = vector.shape_cast %68 : vector<2x4xf32> to vector<2x4x1xf32>
    %71 = vector.broadcast %70 : vector<2x4x1xf32> to vector<2x4x16xf32>
    %72 = arith.mulf %69, %71 : vector<2x4x16xf32>
    %c0_21 = arith.constant 0 : index
    %c0_22 = arith.constant 0 : index
    %c0_23 = arith.constant 0 : index
    %73 = vector.load %arg5[%c0_21, %c0_22, %c0_23] : memref<2x4x16xf32, #tpu.memory_space<vmem>>, vector<2x4x16xf32>
    tpu.vector_store %arg5[%c0_21, %c0_22, %c0_23], %72 {strides = array<i32>} : memref<2x4x16xf32, #tpu.memory_space<vmem>>, vector<2x4x16xf32>,
    return
  }
  func.func @transform_0(%arg0: i32) -> (i32, i32, i32) {
    %c0_i32 = arith.constant 0 : i32
    %c0_i32_0 = arith.constant 0 : i32
    %c0_i32_1 = arith.constant 0 : i32
    return %arg0, %c0_i32, %c0_i32_0 : i32, i32, i32
  }
  func.func @transform_1(%arg0: i32) -> (i32, i32) {
    %c0_i32 = arith.constant 0 : i32
    %c0_i32_0 = arith.constant 0 : i32
    %c0_i32_1 = arith.constant 0 : i32
    return %c0_i32, %c0_i32_0 : i32, i32
  }
  func.func @transform_2(%arg0: i32) -> (i32, i32) {
    %c0_i32 = arith.constant 0 : i32
    %c0_i32_0 = arith.constant 0 : i32
    %c0_i32_1 = arith.constant 0 : i32
    return %c0_i32, %c0_i32_0 : i32, i32
  }
  func.func @transform_3(%arg0: i32) -> (i32, i32) {
    %c0_i32 = arith.constant 0 : i32
    %c0_i32_0 = arith.constant 0 : i32
    %c0_i32_1 = arith.constant 0 : i32
    return %c0_i32, %c0_i32_0 : i32, i32
  }
  func.func @transform_4(%arg0: i32) -> (i32, i32, i32) {
    %c0_i32 = arith.constant 0 : i32
    %c0_i32_0 = arith.constant 0 : i32
    %c0_i32_1 = arith.constant 0 : i32
    return %arg0, %c0_i32, %c0_i32_0 : i32, i32, i32
  }
}

</mosaic_0001>

<llo_original>
// kernel: tpu_custom_call.1
$region0: #{tpu_custom_call.1}
  #allocation0 [shape = 'u32[]', space=smem, size = 0x4, offset = 0x4, fixed_abs, tag = 'smem constant byte address 0x4 - core index']
  #allocation1 [shape = 'u32[144,128]{1,0:T(1,128)}', space=vmem, size = 0x12000, scoped, tag = 'internal scratch']
  %s0 = inlined_call_operand.vmem [shape: f32[2,4,16], index: 0, kind: input, shape index: {}]
  %s1 = inlined_call_operand.hbm [shape: f32[4,16], index: 1, kind: input, shape index: {}]
  %s2 = inlined_call_operand.vmem [shape: f32[16,16], index: 2, kind: input, shape index: {}]
  %s3 = inlined_call_operand.vmem [shape: f32[16,4], index: 3, kind: input, shape index: {}]
  %s4 = inlined_call_operand.hbm [shape: f32[2,4,16], index: 4, kind: output, shape index: {}]
  %s5 = sld [smem:[#allocation0]]
  $region30: #{tpu_custom_call.1} parent=0
    _
  %s7 = ssub.s32 1, %s5
  %s8 = scalar_select 0, %s7, %s5
  $region1: #{tpu_custom_call.1} parent=0
    #allocation2 [shape = 'u8[2048]{0}', space=vmem, size = 0x800, scoped, tag = 'input window, operand 1, single buffered']
    #allocation3 [shape = 's32[1]{0}', space=sflag, size = 0x4, scoped, tag = 'scoped memory for tpu_custom_call.1']
    #allocation4 [shape = 's32[1]{0}', space=sflag, size = 0x4, scoped, tag = 'scoped memory for tpu_custom_call.1']
    #allocation5 [shape = 'u8[4096]{0}', space=vmem, size = 0x1000, scoped, tag = 'output window, operand 0, single buffered']
    %9 = vsyncpa [#allocation3], 0
    %10 = vsyncpa [#allocation4], 0
    // Predicated region
    $region2: #{tpu_custom_call.1} parent=1 // pred_check
      _
    $region3: #{tpu_custom_call.1} parent=1 // pred_check_branch
      %12 = sbr.rel (0) target = $region5
    $region4: #{tpu_custom_call.1} parent=1 // pred_region
      _
    $region5: #{tpu_custom_call.1} parent=1 // pred_fallthru
      _
    // Predicated region
    $region6: #{tpu_custom_call.1} parent=1 // pred_check
      _
    $region7: #{tpu_custom_call.1} parent=1 // pred_check_branch
      %14 = sbr.rel (0) target = $region9
    $region8: #{tpu_custom_call.1} parent=1 // pred_region
      %s16 = ssub.s32 64, 64
      %17 = vsyncadd [#allocation3], %s16
      %s19 = sshll.u32 [#allocation2], 4
      %s20 = int_to_ptr.vmem [resolvable:$true] %s19
      %22 = dma.hbm_to_vmem [thread:$0]  %s1, 64, %s20, [#allocation3]
    $region9: #{tpu_custom_call.1} parent=1 // pred_fallthru
      _
    // Predicated region
    $region10: #{tpu_custom_call.1} parent=1 // pred_check
      _
    $region11: #{tpu_custom_call.1} parent=1 // pred_check_branch
      %24 = sbr.rel (0) target = $region13
    $region12: #{tpu_custom_call.1} parent=1 // pred_region
      _
    $region13: #{tpu_custom_call.1} parent=1 // pred_fallthru
      _
    // Predicated region
    $region14: #{tpu_custom_call.1} parent=1 // pred_check
      _
    $region15: #{tpu_custom_call.1} parent=1 // pred_check_branch
      %26 = sbr.rel (0) target = $region17
    $region16: #{tpu_custom_call.1} parent=1 // pred_region
      _
    $region17: #{tpu_custom_call.1} parent=1 // pred_fallthru
      _
    // Predicated region
    $region18: #{tpu_custom_call.1} parent=1 // pred_check
      _
    $region19: #{tpu_custom_call.1} parent=1 // pred_check_branch
      %28 = sbr.rel (0) target = $region21
    $region20: #{tpu_custom_call.1} parent=1 // pred_region
      %29 = dma.done [#allocation3], 64
    $region21: #{tpu_custom_call.1} parent=1 // pred_fallthru
      _
    %v30 = vld [vmem:[%s0] sm:$0xf]
    %v31 = vld [vmem:[%s0 + $0x4] sm:$0xf]
    %vm32 = vcmask 125952
    %v33 = vsel %vm32, %v30, 0.0
    %34 = vadd.xlane.f32.xlu0 %v33
    %v35 = vpop.xlane.xlu0 %34
    %v36 = vsel %vm32, %v31, 0.0
    %37 = vadd.xlane.f32.xlu0 %v36
    %v38 = vpop.xlane.xlu0 %37
    %v39 = vmul.f32 %v35, 0.0625
    %v40 = vmul.f32 %v38, 0.0625
    %v41 = vld [vmem:[#allocation2] sm:$0xf]
    %v42 = vld [vmem:[%s2] sm:$0xff]
    %v43 = vld [vmem:[%s2 + $0x8] sm:$0xff]
    %v44 = vld [vmem:[%s3] sm:$0xff]
    %v45 = vld [vmem:[%s3 + $0x8] sm:$0xff]
    %v46 = vmul.f32 %v39, 0.5
    %v47 = vmul.f32 %v40, 0.5
    %v48 = vadd.f32 %v46, 0.7853982
    %v49 = vadd.f32 %v47, 0.7853982
    %v50 = vand.u32 2147483647, %v48
    %vm51 = vcmp.le.f32.partialorder %v50, 0.7853982
    %vm52 = vcmp.lt.s32.totalorder %v48, 0
    %v53 = vand.u32 %v48, 2139095040
    %v54 = vshrl.u32 %v53, 23
    %v55 = vsub.s32 %v54, 127
    %v56 = vand.u32 2147483647, %v48
    %v57 = vand.u32 %v56, 8388607
    %v58 = vor.u32 %v57, 8388608
    %v59 = vsub.s32 0, %v58
    %v60 = vadd.s32 %v55, 1
    %vm61 = vcmp.gt.s32.totalorder %v60, 0
    %v62 = vsel %vm61, %v60, 0
    %v63 = vshrl.u32 %v62, 5
    %v64 = vand.u32 %v62, 31
    %v65 = vsub.s32 32, %v64
    %v66 = vshrl.u32 683565275, %v65
    %v67 = vshll.u32 683565275, %v64
    %v68 = vshrl.u32 2475754826, %v65
    %v69 = vor.u32 %v67, %v68
    %v70 = vshll.u32 2475754826, %v64
    %v71 = vshrl.u32 2131351028, %v65
    %v72 = vor.u32 %v70, %v71
    %v73 = vshll.u32 2131351028, %v64
    %v74 = vshrl.u32 2102212464, %v65
    %v75 = vor.u32 %v73, %v74
    %v76 = vshll.u32 2102212464, %v64
    %v77 = vshrl.u32 920167782, %v65
    %v78 = vor.u32 %v76, %v77
    %v79 = vshll.u32 920167782, %v64
    %v80 = vshrl.u32 1326507024, %v65
    %v81 = vor.u32 %v79, %v80
    %vm82 = vcmp.lt.s32.totalorder %v63, 1
    %vm83 = vcmp.lt.s32.totalorder %v63, 2
    %vm84 = vcmp.lt.s32.totalorder %v63, 3
    %vm85 = vcmp.lt.s32.totalorder %v63, 4
    %v86 = vsel %vm82, %v66, %v69
    %v87 = vsel %vm85, %v75, 2102212464
    %v88 = vsel %vm84, %v72, %v87
    %v89 = vsel %vm83, %v86, %v88
    %v90 = vsel %vm82, %v69, %v72
    %v91 = vsel %vm85, %v78, 920167782
    %v92 = vsel %vm84, %v75, %v91
    %v93 = vsel %vm83, %v90, %v92
    %v94 = vsel %vm82, %v72, %v75
    %v95 = vsel %vm85, %v81, 1326507024
    %v96 = vsel %vm84, %v78, %v95
    %v97 = vsel %vm83, %v94, %v96
    %v98 = vshll.u32 %v58, 8
    %v99 = vmul.u32.u64.compose %v98, %v97
    %v100 = vextract.low.u32 %v99
    %v101 = vextract.high.u32 %v99
    %v102 = vmul.u32.u64.compose %v98, %v93
    %v103 = vextract.low.u32 %v102
    %v104 = vextract.high.u32 %v102
    %v105 = vmul.u32 %v98, %v89
    %v106 = vadd.s32 %v101, %v103
    %vm107 = vc.u32 %v101, %v103
    %v108 = vadd.s32 %v104, 1
    %v109 = vsel %vm107, %v108, %v104
    %v110 = vadd.s32 %v105, %v109
    %v111 = vadd.s32 %v110, 536870912
    %v112 = vshrl.u32 %v111, 30
    %v113 = vshll.u32 %v112, 30
    %v114 = vsub.s32 %v110, %v113
    %vm115 = vcmp.lt.s32.totalorder %v114, 0
    %v116 = vsub.s32 0, %v114
    %v117 = vsel %vm115, %v116, %v114
    %v118 = vclz %v117
    %v119 = vsub.s32 %v118, 2
    %vm120 = vcmp.gt.s32.totalorder 0, %v119
    %v121 = vsel %vm120, 0, %v119
    %v122 = vsub.s32 32, %v121
    %v123 = vshll.u32 %v114, %v121
    %v124 = vshrl.u32 %v106, %v122
    %v125 = vor.u32 %v123, %v124
    %v126 = vsub.s32 4294967266, %v121
    %v127 = vadd.s32 %v126, 127
    %v128 = vshll.u32 %v127, 23
    %v129 = vor.u32 4788187, %v128
    %v130 = vand.u32 2147483647, %v129
    %v132 = vcvt.s32.f32 %v125
    %v133 = vmul.f32 %v132, %v130
    %v134 = vxor.u32 %v133, 2147483648
    %v135 = vsel %vm52, %v134, %v133
    %v136 = vsub.s32 4, %v112
    %v137 = vsel %vm52, %v136, %v112
    %v138 = vsel %vm51, %v48, %v135
    %v139 = vsel %vm51, 0, %v137
    %v140 = vcosq.f32.pop %v138
    %v141 = vsinq.f32.pop %v138
    %vm142 = vweird.f32 %v48
    %v143 = vand.u32 %v139, 3
    %vm144 = vcmp.lt.s32.totalorder %v143, 2
    %vm145 = vcmp.eq.s32.totalorder %v143, 0
    %v146 = vxor.u32 %v141, 2147483648
    %v147 = vsel %vm145, %v140, %v146
    %vm148 = vcmp.eq.s32.totalorder %v143, 2
    %v149 = vxor.u32 %v140, 2147483648
    %v150 = vsel %vm148, %v149, %v141
    %v151 = vsel %vm144, %v147, %v150
    %v152 = vsel %vm142, nan, %v151
    %v153 = vand.u32 2147483647, %v49
    %vm154 = vcmp.le.f32.partialorder %v153, 0.7853982
    %vm155 = vcmp.lt.s32.totalorder %v49, 0
    %v156 = vand.u32 %v49, 2139095040
    %v157 = vshrl.u32 %v156, 23
    %v158 = vsub.s32 %v157, 127
    %v159 = vand.u32 2147483647, %v49
    %v160 = vand.u32 %v159, 8388607
    %v161 = vor.u32 %v160, 8388608
    %v162 = vsub.s32 0, %v161
    %v163 = vadd.s32 %v158, 1
    %vm164 = vcmp.gt.s32.totalorder %v163, 0
    %v165 = vsel %vm164, %v163, 0
    %v166 = vshrl.u32 %v165, 5
    %v167 = vand.u32 %v165, 31
    %v168 = vsub.s32 32, %v167
    %v169 = vshrl.u32 683565275, %v168
    %v170 = vshll.u32 683565275, %v167
    %v171 = vshrl.u32 2475754826, %v168
    %v172 = vor.u32 %v170, %v171
    %v173 = vshll.u32 2475754826, %v167
    %v174 = vshrl.u32 2131351028, %v168
    %v175 = vor.u32 %v173, %v174
    %v176 = vshll.u32 2131351028, %v167
    %v177 = vshrl.u32 2102212464, %v168
    %v178 = vor.u32 %v176, %v177
    %v179 = vshll.u32 2102212464, %v167
    %v180 = vshrl.u32 920167782, %v168
    %v181 = vor.u32 %v179, %v180
    %v182 = vshll.u32 920167782, %v167
    %v183 = vshrl.u32 1326507024, %v168
    %v184 = vor.u32 %v182, %v183
    %vm185 = vcmp.lt.s32.totalorder %v166, 1
    %vm186 = vcmp.lt.s32.totalorder %v166, 2
    %vm187 = vcmp.lt.s32.totalorder %v166, 3
    %vm188 = vcmp.lt.s32.totalorder %v166, 4
    %v189 = vsel %vm185, %v169, %v172
    %v190 = vsel %vm188, %v178, 2102212464
    %v191 = vsel %vm187, %v175, %v190
    %v192 = vsel %vm186, %v189, %v191
    %v193 = vsel %vm185, %v172, %v175
    %v194 = vsel %vm188, %v181, 920167782
    %v195 = vsel %vm187, %v178, %v194
    %v196 = vsel %vm186, %v193, %v195
    %v197 = vsel %vm185, %v175, %v178
    %v198 = vsel %vm188, %v184, 1326507024
    %v199 = vsel %vm187, %v181, %v198
    %v200 = vsel %vm186, %v197, %v199
    %v201 = vshll.u32 %v161, 8
    %v202 = vmul.u32.u64.compose %v201, %v200
    %v203 = vextract.low.u32 %v202
    %v204 = vextract.high.u32 %v202
    %v205 = vmul.u32.u64.compose %v201, %v196
    %v206 = vextract.low.u32 %v205
    %v207 = vextract.high.u32 %v205
    %v208 = vmul.u32 %v201, %v192
    %v209 = vadd.s32 %v204, %v206
    %vm210 = vc.u32 %v204, %v206
    %v211 = vadd.s32 %v207, 1
    %v212 = vsel %vm210, %v211, %v207
    %v213 = vadd.s32 %v208, %v212
    %v214 = vadd.s32 %v213, 536870912
    %v215 = vshrl.u32 %v214, 30
    %v216 = vshll.u32 %v215, 30
    %v217 = vsub.s32 %v213, %v216
    %vm218 = vcmp.lt.s32.totalorder %v217, 0
    %v219 = vsub.s32 0, %v217
    %v220 = vsel %vm218, %v219, %v217
    %v221 = vclz %v220
    %v222 = vsub.s32 %v221, 2
    %vm223 = vcmp.gt.s32.totalorder 0, %v222
    %v224 = vsel %vm223, 0, %v222
    %v225 = vsub.s32 32, %v224
    %v226 = vshll.u32 %v217, %v224
    %v227 = vshrl.u32 %v209, %v225
    %v228 = vor.u32 %v226, %v227
    %v229 = vsub.s32 4294967266, %v224
    %v230 = vadd.s32 %v229, 127
    %v231 = vshll.u32 %v230, 23
    %v232 = vor.u32 4788187, %v231
    %v233 = vand.u32 2147483647, %v232
    %v235 = vcvt.s32.f32 %v228
    %v236 = vmul.f32 %v235, %v233
    %v237 = vxor.u32 %v236, 2147483648
    %v238 = vsel %vm155, %v237, %v236
    %v239 = vsub.s32 4, %v215
    %v240 = vsel %vm155, %v239, %v215
    %v241 = vsel %vm154, %v49, %v238
    %v242 = vsel %vm154, 0, %v240
    %v243 = vcosq.f32.pop %v241
    %v244 = vsinq.f32.pop %v241
    %vm245 = vweird.f32 %v49
    %v246 = vand.u32 %v242, 3
    %vm247 = vcmp.lt.s32.totalorder %v246, 2
    %vm248 = vcmp.eq.s32.totalorder %v246, 0
    %v249 = vxor.u32 %v244, 2147483648
    %v250 = vsel %vm248, %v243, %v249
    %vm251 = vcmp.eq.s32.totalorder %v246, 2
    %v252 = vxor.u32 %v243, 2147483648
    %v253 = vsel %vm251, %v252, %v244
    %v254 = vsel %vm247, %v250, %v253
    %v255 = vsel %vm245, nan, %v254
    %v256 = vand.u32 2147483647, %v48
    %vm257 = vcmp.le.f32.partialorder %v256, 0.7853982
    %vm258 = vcmp.lt.s32.totalorder %v48, 0
    %v259 = vand.u32 %v48, 2139095040
    %v260 = vshrl.u32 %v259, 23
    %v261 = vsub.s32 %v260, 127
    %v262 = vand.u32 2147483647, %v48
    %v263 = vand.u32 %v262, 8388607
    %v264 = vor.u32 %v263, 8388608
    %v265 = vsub.s32 0, %v264
    %v266 = vadd.s32 %v261, 1
    %vm267 = vcmp.gt.s32.totalorder %v266, 0
    %v268 = vsel %vm267, %v266, 0
    %v269 = vshrl.u32 %v268, 5
    %v270 = vand.u32 %v268, 31
    %v271 = vsub.s32 32, %v270
    %v272 = vshrl.u32 683565275, %v271
    %v273 = vshll.u32 683565275, %v270
    %v274 = vshrl.u32 2475754826, %v271
    %v275 = vor.u32 %v273, %v274
    %v276 = vshll.u32 2475754826, %v270
    %v277 = vshrl.u32 2131351028, %v271
    %v278 = vor.u32 %v276, %v277
    %v279 = vshll.u32 2131351028, %v270
    %v280 = vshrl.u32 2102212464, %v271
    %v281 = vor.u32 %v279, %v280
    %v282 = vshll.u32 2102212464, %v270
    %v283 = vshrl.u32 920167782, %v271
    %v284 = vor.u32 %v282, %v283
    %v285 = vshll.u32 920167782, %v270
    %v286 = vshrl.u32 1326507024, %v271
    %v287 = vor.u32 %v285, %v286
    %vm288 = vcmp.lt.s32.totalorder %v269, 1
    %vm289 = vcmp.lt.s32.totalorder %v269, 2
    %vm290 = vcmp.lt.s32.totalorder %v269, 3
    %vm291 = vcmp.lt.s32.totalorder %v269, 4
    %v292 = vsel %vm288, %v272, %v275
    %v293 = vsel %vm291, %v281, 2102212464
    %v294 = vsel %vm290, %v278, %v293
    %v295 = vsel %vm289, %v292, %v294
    %v296 = vsel %vm288, %v275, %v278
    %v297 = vsel %vm291, %v284, 920167782
    %v298 = vsel %vm290, %v281, %v297
    %v299 = vsel %vm289, %v296, %v298
    %v300 = vsel %vm288, %v278, %v281
    %v301 = vsel %vm291, %v287, 1326507024
    %v302 = vsel %vm290, %v284, %v301
    %v303 = vsel %vm289, %v300, %v302
    %v304 = vshll.u32 %v264, 8
    %v305 = vmul.u32.u64.compose %v304, %v303
    %v306 = vextract.low.u32 %v305
    %v307 = vextract.high.u32 %v305
    %v308 = vmul.u32.u64.compose %v304, %v299
    %v309 = vextract.low.u32 %v308
    %v310 = vextract.high.u32 %v308
    %v311 = vmul.u32 %v304, %v295
    %v312 = vadd.s32 %v307, %v309
    %vm313 = vc.u32 %v307, %v309
    %v314 = vadd.s32 %v310, 1
    %v315 = vsel %vm313, %v314, %v310
    %v316 = vadd.s32 %v311, %v315
    %v317 = vadd.s32 %v316, 536870912
    %v318 = vshrl.u32 %v317, 30
    %v319 = vshll.u32 %v318, 30
    %v320 = vsub.s32 %v316, %v319
    %vm321 = vcmp.lt.s32.totalorder %v320, 0
    %v322 = vsub.s32 0, %v320
    %v323 = vsel %vm321, %v322, %v320
    %v324 = vclz %v323
    %v325 = vsub.s32 %v324, 2
    %vm326 = vcmp.gt.s32.totalorder 0, %v325
    %v327 = vsel %vm326, 0, %v325
    %v328 = vsub.s32 32, %v327
    %v329 = vshll.u32 %v320, %v327
    %v330 = vshrl.u32 %v312, %v328
    %v331 = vor.u32 %v329, %v330
    %v332 = vsub.s32 4294967266, %v327
    %v333 = vadd.s32 %v332, 127
    %v334 = vshll.u32 %v333, 23
    %v335 = vor.u32 4788187, %v334
    %v336 = vand.u32 2147483647, %v335
    %v338 = vcvt.s32.f32 %v331
    %v339 = vmul.f32 %v338, %v336
    %v340 = vxor.u32 %v339, 2147483648
    %v341 = vsel %vm258, %v340, %v339
    %v342 = vsub.s32 4, %v318
    %v343 = vsel %vm258, %v342, %v318
    %v344 = vsel %vm257, %v48, %v341
    %v345 = vsel %vm257, 0, %v343
    %v346 = vcosq.f32.pop %v344
    %v347 = vsinq.f32.pop %v344
    %vm348 = vweird.f32 %v48
    %v349 = vadd.s32 %v345, 3
    %v350 = vand.u32 %v349, 3
    %vm351 = vcmp.lt.s32.totalorder %v350, 2
    %vm352 = vcmp.eq.s32.totalorder %v350, 0
    %v353 = vxor.u32 %v347, 2147483648
    %v354 = vsel %vm352, %v346, %v353
    %vm355 = vcmp.eq.s32.totalorder %v350, 2
    %v356 = vxor.u32 %v346, 2147483648
    %v357 = vsel %vm355, %v356, %v347
    %v358 = vsel %vm351, %v354, %v357
    %v359 = vsel %vm348, nan, %v358
    %v360 = vand.u32 2147483647, %v49
    %vm361 = vcmp.le.f32.partialorder %v360, 0.7853982
    %vm362 = vcmp.lt.s32.totalorder %v49, 0
    %v363 = vand.u32 %v49, 2139095040
    %v364 = vshrl.u32 %v363, 23
    %v365 = vsub.s32 %v364, 127
    %v366 = vand.u32 2147483647, %v49
    %v367 = vand.u32 %v366, 8388607
    %v368 = vor.u32 %v367, 8388608
    %v369 = vsub.s32 0, %v368
    %v370 = vadd.s32 %v365, 1
    %vm371 = vcmp.gt.s32.totalorder %v370, 0
    %v372 = vsel %vm371, %v370, 0
    %v373 = vshrl.u32 %v372, 5
    %v374 = vand.u32 %v372, 31
    %v375 = vsub.s32 32, %v374
    %v376 = vshrl.u32 683565275, %v375
    %v377 = vshll.u32 683565275, %v374
    %v378 = vshrl.u32 2475754826, %v375
    %v379 = vor.u32 %v377, %v378
    %v380 = vshll.u32 2475754826, %v374
    %v381 = vshrl.u32 2131351028, %v375
    %v382 = vor.u32 %v380, %v381
    %v383 = vshll.u32 2131351028, %v374
    %v384 = vshrl.u32 2102212464, %v375
    %v385 = vor.u32 %v383, %v384
    %v386 = vshll.u32 2102212464, %v374
    %v387 = vshrl.u32 920167782, %v375
    %v388 = vor.u32 %v386, %v387
    %v389 = vshll.u32 920167782, %v374
    %v390 = vshrl.u32 1326507024, %v375
    %v391 = vor.u32 %v389, %v390
    %vm392 = vcmp.lt.s32.totalorder %v373, 1
    %vm393 = vcmp.lt.s32.totalorder %v373, 2
    %vm394 = vcmp.lt.s32.totalorder %v373, 3
    %vm395 = vcmp.lt.s32.totalorder %v373, 4
    %v396 = vsel %vm392, %v376, %v379
    %v397 = vsel %vm395, %v385, 2102212464
    %v398 = vsel %vm394, %v382, %v397
    %v399 = vsel %vm393, %v396, %v398
    %v400 = vsel %vm392, %v379, %v382
    %v401 = vsel %vm395, %v388, 920167782
    %v402 = vsel %vm394, %v385, %v401
    %v403 = vsel %vm393, %v400, %v402
    %v404 = vsel %vm392, %v382, %v385
    %v405 = vsel %vm395, %v391, 1326507024
    %v406 = vsel %vm394, %v388, %v405
    %v407 = vsel %vm393, %v404, %v406
    %v408 = vshll.u32 %v368, 8
    %v409 = vmul.u32.u64.compose %v408, %v407
    %v410 = vextract.low.u32 %v409
    %v411 = vextract.high.u32 %v409
    %v412 = vmul.u32.u64.compose %v408, %v403
    %v413 = vextract.low.u32 %v412
    %v414 = vextract.high.u32 %v412
    %v415 = vmul.u32 %v408, %v399
    %v416 = vadd.s32 %v411, %v413
    %vm417 = vc.u32 %v411, %v413
    %v418 = vadd.s32 %v414, 1
    %v419 = vsel %vm417, %v418, %v414
    %v420 = vadd.s32 %v415, %v419
    %v421 = vadd.s32 %v420, 536870912
    %v422 = vshrl.u32 %v421, 30
    %v423 = vshll.u32 %v422, 30
    %v424 = vsub.s32 %v420, %v423
    %vm425 = vcmp.lt.s32.totalorder %v424, 0
    %v426 = vsub.s32 0, %v424
    %v427 = vsel %vm425, %v426, %v424
    %v428 = vclz %v427
    %v429 = vsub.s32 %v428, 2
    %vm430 = vcmp.gt.s32.totalorder 0, %v429
    %v431 = vsel %vm430, 0, %v429
    %v432 = vsub.s32 32, %v431
    %v433 = vshll.u32 %v424, %v431
    %v434 = vshrl.u32 %v416, %v432
    %v435 = vor.u32 %v433, %v434
    %v436 = vsub.s32 4294967266, %v431
    %v437 = vadd.s32 %v436, 127
    %v438 = vshll.u32 %v437, 23
    %v439 = vor.u32 4788187, %v438
    %v440 = vand.u32 2147483647, %v439
    %v442 = vcvt.s32.f32 %v435
    %v443 = vmul.f32 %v442, %v440
    %v444 = vxor.u32 %v443, 2147483648
    %v445 = vsel %vm362, %v444, %v443
    %v446 = vsub.s32 4, %v422
    %v447 = vsel %vm362, %v446, %v422
    %v448 = vsel %vm361, %v49, %v445
    %v449 = vsel %vm361, 0, %v447
    %v450 = vcosq.f32.pop %v448
    %v451 = vsinq.f32.pop %v448
    %vm452 = vweird.f32 %v49
    %v453 = vadd.s32 %v449, 3
    %v454 = vand.u32 %v453, 3
    %vm455 = vcmp.lt.s32.totalorder %v454, 2
    %vm456 = vcmp.eq.s32.totalorder %v454, 0
    %v457 = vxor.u32 %v451, 2147483648
    %v458 = vsel %vm456, %v450, %v457
    %vm459 = vcmp.eq.s32.totalorder %v454, 2
    %v460 = vxor.u32 %v450, 2147483648
    %v461 = vsel %vm459, %v460, %v451
    %v462 = vsel %vm455, %v458, %v461
    %v463 = vsel %vm452, nan, %v462
    %vm464 = vcmp.gt.f32.partialorder %v41, 0.5
    %v465 = vsel %vm464, 1, 0
    %v466 = vlaneseq
    %v467 = vshrl.u32 %v466, 7
    %v468 = vsub.s32 0, %v467
    %v469 = vrot.slane %v465, %v468
    %vm470 = vcmp.eq.s32.totalorder %v469, 1
    %v471 = vlaneseq
    %v472 = vshrl.u32 %v471, 7
    %v473 = vsub.s32 0, %v472
    %v474 = vrot.slane %v359, %v473
    %v475 = vlaneseq
    %v476 = vshrl.u32 %v475, 7
    %v477 = vsub.s32 0, %v476
    %v478 = vrot.slane %v463, %v477
    %v479 = vlaneseq
    %v480 = vshrl.u32 %v479, 7
    %v481 = vsub.s32 0, %v480
    %v482 = vrot.slane %v152, %v481
    %v483 = vlaneseq
    %v484 = vshrl.u32 %v483, 7
    %v485 = vsub.s32 0, %v484
    %v486 = vrot.slane %v255, %v485
    %vm489 = vcmask 1041409
    %v490 = vsel %vm489, %v478, %v474
    %v494 = vsel %vm489, %v486, %v482
    %v496 = vsel %vm470, %v490, %v494
    %v497 = vlaneseq
    %v498 = vshrl.u32 %v497, 7
    %v499 = vsub.s32 1, %v498
    %v500 = vrot.slane %v465, %v499
    %vm501 = vcmp.eq.s32.totalorder %v500, 1
    %v502 = vlaneseq
    %v503 = vshrl.u32 %v502, 7
    %v504 = vsub.s32 1, %v503
    %v505 = vrot.slane %v359, %v504
    %v506 = vlaneseq
    %v507 = vshrl.u32 %v506, 7
    %v508 = vsub.s32 1, %v507
    %v509 = vrot.slane %v463, %v508
    %v510 = vlaneseq
    %v511 = vshrl.u32 %v510, 7
    %v512 = vsub.s32 1, %v511
    %v513 = vrot.slane %v152, %v512
    %v514 = vlaneseq
    %v515 = vshrl.u32 %v514, 7
    %v516 = vsub.s32 1, %v515
    %v517 = vrot.slane %v255, %v516
    %v520 = vsel %vm489, %v509, %v505
    %v524 = vsel %vm489, %v517, %v513
    %v526 = vsel %vm501, %v520, %v524
    %v527 = vmul.f32 %v496, %v526
    %v528 = vlaneseq
    %v529 = vshrl.u32 %v528, 7
    %v530 = vsub.s32 2, %v529
    %v531 = vrot.slane %v465, %v530
    %vm532 = vcmp.eq.s32.totalorder %v531, 1
    %v533 = vlaneseq
    %v534 = vshrl.u32 %v533, 7
    %v535 = vsub.s32 2, %v534
    %v536 = vrot.slane %v359, %v535
    %v537 = vlaneseq
    %v538 = vshrl.u32 %v537, 7
    %v539 = vsub.s32 2, %v538
    %v540 = vrot.slane %v463, %v539
    %v541 = vlaneseq
    %v542 = vshrl.u32 %v541, 7
    %v543 = vsub.s32 2, %v542
    %v544 = vrot.slane %v152, %v543
    %v545 = vlaneseq
    %v546 = vshrl.u32 %v545, 7
    %v547 = vsub.s32 2, %v546
    %v548 = vrot.slane %v255, %v547
    %v551 = vsel %vm489, %v540, %v536
    %v555 = vsel %vm489, %v548, %v544
    %v557 = vsel %vm532, %v551, %v555
    %v558 = vmul.f32 %v527, %v557
    %v559 = vlaneseq
    %v560 = vshrl.u32 %v559, 7
    %v561 = vsub.s32 3, %v560
    %v562 = vrot.slane %v465, %v561
    %vm563 = vcmp.eq.s32.totalorder %v562, 1
    %v564 = vlaneseq
    %v565 = vshrl.u32 %v564, 7
    %v566 = vsub.s32 3, %v565
    %v567 = vrot.slane %v359, %v566
    %v568 = vlaneseq
    %v569 = vshrl.u32 %v568, 7
    %v570 = vsub.s32 3, %v569
    %v571 = vrot.slane %v463, %v570
    %v572 = vlaneseq
    %v573 = vshrl.u32 %v572, 7
    %v574 = vsub.s32 3, %v573
    %v575 = vrot.slane %v152, %v574
    %v576 = vlaneseq
    %v577 = vshrl.u32 %v576, 7
    %v578 = vsub.s32 3, %v577
    %v579 = vrot.slane %v255, %v578
    %v582 = vsel %vm489, %v571, %v567
    %v586 = vsel %vm489, %v579, %v575
    %v588 = vsel %vm563, %v582, %v586
    %v589 = vmul.f32 %v558, %v588
    %vm590 = vcmask 130048
    %v592 = vsel %vm590, %v589, 0
    %594 = vmatprep.subr.mxu0 0.0
    %595 = vmatpush1.msra.mxu0 %v42
    %596 = vmatprep.subr.mxu0 0.0
    %597 = vmatpush1.msra.mxu0 %v43
    %598 = vmatprep.subr.mxu0 0.0
    %599 = vmatpush1.msra.mxu0 0.0
    %600 = vmatprep.subr.mxu0 0.0
    %601 = vmatpush1.msra.mxu0 0.0
    %602 = vmatprep.subr.mxu0 0.0
    %603 = vmatpush1.msra.mxu0 0.0
    %604 = vmatprep.subr.mxu0 0.0
    %605 = vmatpush1.msra.mxu0 0.0
    %606 = vmatprep.subr.mxu0 0.0
    %607 = vmatpush1.msra.mxu0 0.0
    %608 = vmatprep.subr.mxu0 0.0
    %609 = vmatpush1.msra.mxu0 0.0
    %610 = vmatprep.subr.mxu0 0.0
    %611 = vmatpush1.msra.mxu0 0.0
    %612 = vmatprep.subr.mxu0 0.0
    %613 = vmatpush1.msra.mxu0 0.0
    %614 = vmatprep.subr.mxu0 0.0
    %615 = vmatpush1.msra.mxu0 0.0
    %616 = vmatprep.subr.mxu0 0.0
    %617 = vmatpush1.msra.mxu0 0.0
    %618 = vmatprep.subr.mxu0 0.0
    %619 = vmatpush1.msra.mxu0 0.0
    %620 = vmatprep.subr.mxu0 0.0
    %621 = vmatpush1.msra.mxu0 0.0
    %622 = vmatprep.subr.mxu0 0.0
    %623 = vmatpush1.msra.mxu0 0.0
    %624 = vmatprep.subr.mxu0 0.0
    %625 = vmatpush1.msra.mxu0 0.0
    %626 = vmatprep.subr.mxu0 0.0
    %627 = vmatpush1.msra.mxu0 0.0
    %628 = vmatprep.subr.mxu0 0.0
    %629 = vmatpush1.msra.mxu0 0.0
    %630 = vmatprep.subr.mxu0 0.0
    %631 = vmatpush1.msra.mxu0 0.0
    %632 = vmatprep.subr.mxu0 0.0
    %633 = vmatpush1.msra.mxu0 0.0
    %634 = vmatprep.subr.mxu0 0.0
    %635 = vmatpush1.msra.mxu0 0.0
    %636 = vmatprep.subr.mxu0 0.0
    %637 = vmatpush1.msra.mxu0 0.0
    %638 = vmatprep.subr.mxu0 0.0
    %639 = vmatpush1.msra.mxu0 0.0
    %640 = vmatprep.subr.mxu0 0.0
    %641 = vmatpush1.msra.mxu0 0.0
    %642 = vmatprep.subr.mxu0 0.0
    %643 = vmatpush1.msra.mxu0 0.0
    %644 = vmatprep.subr.mxu0 0.0
    %645 = vmatpush1.msra.mxu0 0.0
    %646 = vmatprep.subr.mxu0 0.0
    %647 = vmatpush1.msra.mxu0 0.0
    %648 = vmatprep.subr.mxu0 0.0
    %649 = vmatpush1.msra.mxu0 0.0
    %650 = vmatprep.subr.mxu0 0.0
    %651 = vmatpush1.msra.mxu0 0.0
    %652 = vmatprep.subr.mxu0 0.0
    %653 = vmatpush1.msra.mxu0 0.0
    %654 = vmatprep.subr.mxu0 0.0
    %655 = vmatpush1.msra.mxu0 0.0
    %656 = vmatprep.subr.mxu0 0.0
    %657 = vmatpush1.msra.mxu0 0.0
    %658 = vmatprep.mubr.f32.mxu0 0.0
    %659 = vmatmul.mubr.f32.gmra.mrb[0].mxu0 %v592
    %v660 = vpop.f32.mrb[0].mxu0
    %v661 = vadd.f32 0.0, %v660
    %v662 = vpop.f32.mrb[0].mxu0
    %663 = vdwg.mxu0
    %v664 = vmul.f32 %v661, %v661
    %v666 = vsel %vm590, %v664, 0
    %668 = vmatprep.subr.mxu0 0.0
    %669 = vmatpush1.msra.mxu0 %v44
    %670 = vmatprep.subr.mxu0 0.0
    %671 = vmatpush1.msra.mxu0 %v45
    %672 = vmatprep.subr.mxu0 0.0
    %673 = vmatpush1.msra.mxu0 0.0
    %674 = vmatprep.subr.mxu0 0.0
    %675 = vmatpush1.msra.mxu0 0.0
    %676 = vmatprep.subr.mxu0 0.0
    %677 = vmatpush1.msra.mxu0 0.0
    %678 = vmatprep.subr.mxu0 0.0
    %679 = vmatpush1.msra.mxu0 0.0
    %680 = vmatprep.subr.mxu0 0.0
    %681 = vmatpush1.msra.mxu0 0.0
    %682 = vmatprep.subr.mxu0 0.0
    %683 = vmatpush1.msra.mxu0 0.0
    %684 = vmatprep.subr.mxu0 0.0
    %685 = vmatpush1.msra.mxu0 0.0
    %686 = vmatprep.subr.mxu0 0.0
    %687 = vmatpush1.msra.mxu0 0.0
    %688 = vmatprep.subr.mxu0 0.0
    %689 = vmatpush1.msra.mxu0 0.0
    %690 = vmatprep.subr.mxu0 0.0
    %691 = vmatpush1.msra.mxu0 0.0
    %692 = vmatprep.subr.mxu0 0.0
    %693 = vmatpush1.msra.mxu0 0.0
    %694 = vmatprep.subr.mxu0 0.0
    %695 = vmatpush1.msra.mxu0 0.0
    %696 = vmatprep.subr.mxu0 0.0
    %697 = vmatpush1.msra.mxu0 0.0
    %698 = vmatprep.subr.mxu0 0.0
    %699 = vmatpush1.msra.mxu0 0.0
    %700 = vmatprep.subr.mxu0 0.0
    %701 = vmatpush1.msra.mxu0 0.0
    %702 = vmatprep.subr.mxu0 0.0
    %703 = vmatpush1.msra.mxu0 0.0
    %704 = vmatprep.subr.mxu0 0.0
    %705 = vmatpush1.msra.mxu0 0.0
    %706 = vmatprep.subr.mxu0 0.0
    %707 = vmatpush1.msra.mxu0 0.0
    %708 = vmatprep.subr.mxu0 0.0
    %709 = vmatpush1.msra.mxu0 0.0
    %710 = vmatprep.subr.mxu0 0.0
    %711 = vmatpush1.msra.mxu0 0.0
    %712 = vmatprep.subr.mxu0 0.0
    %713 = vmatpush1.msra.mxu0 0.0
    %714 = vmatprep.subr.mxu0 0.0
    %715 = vmatpush1.msra.mxu0 0.0
    %716 = vmatprep.subr.mxu0 0.0
    %717 = vmatpush1.msra.mxu0 0.0
    %718 = vmatprep.subr.mxu0 0.0
    %719 = vmatpush1.msra.mxu0 0.0
    %720 = vmatprep.subr.mxu0 0.0
    %721 = vmatpush1.msra.mxu0 0.0
    %722 = vmatprep.subr.mxu0 0.0
    %723 = vmatpush1.msra.mxu0 0.0
    %724 = vmatprep.subr.mxu0 0.0
    %725 = vmatpush1.msra.mxu0 0.0
    %726 = vmatprep.subr.mxu0 0.0
    %727 = vmatpush1.msra.mxu0 0.0
    %728 = vmatprep.subr.mxu0 0.0
    %729 = vmatpush1.msra.mxu0 0.0
    %730 = vmatprep.subr.mxu0 0.0
    %731 = vmatpush1.msra.mxu0 0.0
    %732 = vmatprep.mubr.f32.mxu0 0.0
    %733 = vmatmul.mubr.f32.gmra.mrb[0].mxu0 %v666
    %v734 = vpop.f32.mrb[0].mxu0
    %v735 = vadd.f32 0.0, %v734
    %v736 = vpop.f32.mrb[0].mxu0
    %737 = vdwg.mxu0
    %v738 = vlaneseq
    %v739 = vshrl.u32 %v738, 7
    %v740 = vsub.s32 0, %v739
    %v741 = vrot.slane %v735, %v740
    %743 = vbcast.lane.b32.xlu0 %v741, 256
    %v744 = vpop.permute.xlu0 %743
    %v745 = vlaneseq
    %v746 = vshrl.u32 %v745, 7
    %v747 = vsub.s32 1, %v746
    %v748 = vrot.slane %v735, %v747
    %750 = vbcast.lane.b32.xlu0 %v748, 256
    %v751 = vpop.permute.xlu0 %750
    %v752 = vmul.f32 %v30, %v744
    %v753 = vmul.f32 %v31, %v751
    %754 = vst.msk [vmem:[#allocation5] sm:$0xf] %vm32, %v752
    %755 = vst.msk [vmem:[#allocation5 + $0x4] sm:$0xf] %vm32, %v753
    // Predicated region
    $region22: #{tpu_custom_call.1} parent=1 // pred_check
      _
    $region23: #{tpu_custom_call.1} parent=1 // pred_check_branch
      %757 = sbr.rel (0) target = $region25
    $region24: #{tpu_custom_call.1} parent=1 // pred_region
      %s759 = ssub.s32 128, 128
      %760 = vsyncadd [#allocation4], %s759
      %s761 = sshll.u32 [#allocation5], 4
      %s762 = int_to_ptr.vmem [resolvable:$true] %s761
      %767 = dma.vmem_to_hbm [thread:$0]  %s762, 128, %s4, [#allocation4], 64, 64, 4
    $region25: #{tpu_custom_call.1} parent=1 // pred_fallthru
      _
    // Predicated region
    $region26: #{tpu_custom_call.1} parent=1 // pred_check
      _
    $region27: #{tpu_custom_call.1} parent=1 // pred_check_branch
      %769 = sbr.rel (0) target = $region29
    $region28: #{tpu_custom_call.1} parent=1 // pred_region
      %770 = dma.done [#allocation4], 128
    $region29: #{tpu_custom_call.1} parent=1 // pred_fallthru
      _
    %771 = vsyncpa [#allocation3], 1
    %772 = vsyncpa [#allocation4], 1

</llo_original>
